<compile_context>
chip_gen: v5e
topology: v5e:2x2
jax: 0.10.0
libtpu: 0.0.40
codegen_flags: <defaults>
</compile_context>

<pallas_src>
import math

import jax
import jax.numpy as jnp
from jax.experimental import pallas as pl
from jax.experimental.pallas import tpu as pltpu


def cac3_kernel(v_ref, e_ref, p_ref, vo_ref, eo_ref):
    v = v_ref[...].astype(jnp.float32)      # (tb, Dp)
    e = e_ref[...].astype(jnp.float32)      # (tb, Dp)
    p = p_ref[...]                          # (12, Dp) f32; unit l -> rows 4l..4l+3 =
                                            #   [w_vv+w_ev, w_ve+w_vv, b_v, b_e]

    # 3 cross&compress units, statically unrolled.
    for l in range(3):
        w_v = p[4 * l + 0:4 * l + 1, :]     # (1, Dp)
        w_e = p[4 * l + 1:4 * l + 2, :]
        b_v = p[4 * l + 2:4 * l + 3, :]
        b_e = p[4 * l + 3:4 * l + 4, :]
        # (C @ w)[r, i] = e[r, i] * dot(v[r, :], w) -> one lane reduction per projection
        # (XLU), so the (B, D, D) outer product C is never formed. Exact f32 accumulation.
        sv = jnp.sum(v * w_v, axis=-1, keepdims=True)   # (tb, 1)
        se = jnp.sum(v * w_e, axis=-1, keepdims=True)   # (tb, 1)
        v_next = e * sv + b_v                           # (tb, Dp)
        e_next = e * se + b_e                           # (tb, Dp)
        v, e = v_next, e_next

    vo_ref[...] = v.astype(vo_ref.dtype)
    eo_ref[...] = e.astype(eo_ref.dtype)


def _round_up(x, m):
    return (x + m - 1) // m * m


def _choose_tb(B, dim_p, itemsize, tb_cap=1024):
    """Batch-tile rows per grid step.

    As large as a conservative VMEM budget allows (amortizes ~0.35us/step overhead and
    keeps the DMA engine near the HBM roofline), while leaving >= 2 grid points so both
    v7x TensorCores get work, and staying sublane-aligned for f32/bf16/int8 tiles.
    """
    budget = 12 * 1024 * 1024              # double-buffered v/e in+out streaming budget
    per_row = 4 * 2 * dim_p * itemsize     # 4 streamed arrays x 2 pipeline buffers
    tb = min(tb_cap, max(32, budget // per_row))
    tb = min(tb, _round_up(pl.cdiv(B, 2), 32))   # keep >= 2 grid points when B allows
    tb = _round_up(tb, 32)
    return B if tb >= B else tb            # full-extent block is always layout-legal


def cac3_forward(v, e, params, *, tb_cap=1024):
    """v, e: (B, 1, dim) (or anything reshapeable to (B, dim)).

    params: list of 3 tuples (w_vv, w_ev, w_ve, b_v, b_e), each of shape (dim, 1).
    Returns (v_out, e_out), each (B, 1, dim) in the input dtype, matching the PyTorch module.
    """
    dim = params[0][0].shape[0]
    io_dtype = v.dtype
    v2 = v.reshape(-1, dim)                # no dtype cast: native-dtype I/O
    e2 = e.reshape(-1, dim)
    B = v2.shape[0]

    # Fold the shared w_vv into each projection once (tiny O(dim) adds) and pack every
    # per-unit parameter into ONE (12, dim) array: rows 4l..4l+3 = [w_v, w_e, b_v, b_e].
    rows = []
    for (w_vv, w_ev, w_ve, b_v, b_e) in params:
        rows.append((w_vv + w_ev).reshape(dim))
        rows.append((w_ve + w_vv).reshape(dim))
        rows.append(b_v.reshape(dim))
        rows.append(b_e.reshape(dim))
    p_pack = jnp.stack(rows, axis=0).astype(jnp.float32)      # (12, dim)

    # Lane-dense last dim: pad D (zeros) only when dim is not a multiple of 128.
    # Zero padding is exact: padded lanes of weights/biases are zero, so they contribute
    # nothing to the dot products and stay zero through every unit.
    dim_p = _round_up(dim, 128)
    if dim_p != dim:
        v2 = jnp.pad(v2, ((0, 0), (0, dim_p - dim)))
        e2 = jnp.pad(e2, ((0, 0), (0, dim_p - dim)))
        p_pack = jnp.pad(p_pack, ((0, 0), (0, dim_p - dim)))

    itemsize = int(jnp.dtype(io_dtype).itemsize)
    tb = _choose_tb(B, dim_p, itemsize, tb_cap=tb_cap)
    grid = (pl.cdiv(B, tb),)               # no batch padding: ragged last block is masked

    row_spec = pl.BlockSpec((tb, dim_p), lambda i: (i, 0))
    par_spec = pl.BlockSpec((12, dim_p), lambda i: (0, 0))    # 12 == full array extent

    cost = pl.CostEstimate(
        flops=24 * B * dim_p,                                  # 3 units x 8*dim per row
        transcendentals=0,
        bytes_accessed=4 * B * dim_p * itemsize + 12 * dim_p * 4,
    )

    vo, eo = pl.pallas_call(
        cac3_kernel,
        out_shape=(jax.ShapeDtypeStruct((B, dim_p), io_dtype),
                   jax.ShapeDtypeStruct((B, dim_p), io_dtype)),
        grid_spec=pltpu.PrefetchScalarGridSpec(
            num_scalar_prefetch=0,
            grid=grid,
            in_specs=[row_spec, row_spec, par_spec],
            out_specs=[row_spec, row_spec],
        ),
        compiler_params=pltpu.CompilerParams(
            # Batch tiles are independent -> Mosaic may shard the grid across both v7x
            # TensorCores (>= 2 grid points by construction when B allows).
            dimension_semantics=("parallel",),
            # tb is budgeted so <= ~12 MiB of streamed double-buffers are needed; 32 MiB
            # is safe on v5e/v6e (128 MiB physical) and v7x (64 MiB physical).
            vmem_limit_bytes=32 * 1024 * 1024,
        ),
        cost_estimate=cost,
    )(v2, e2, p_pack)

    if dim_p != dim:
        vo = vo[:, :dim]
        eo = eo[:, :dim]
    return vo.reshape(-1, 1, dim), eo.reshape(-1, 1, dim)


def cac3_reference(v, e, params):
    """Direct JAX transcription of the PyTorch forward (materializes C)."""
    dim = v.shape[-1]
    for (w_vv, w_ev, w_ve, b_v, b_e) in params:
        C = jnp.matmul(e.reshape(-1, dim, 1), v)                 # (B, D, D)
        v_new = jnp.matmul(C, w_vv) + jnp.matmul(C, w_ev) + b_v  # (B, D, 1)
        e_new = jnp.matmul(C, w_ve) + jnp.matmul(C, w_vv) + b_e  # (B, D, 1)
        v = v_new.reshape(-1, 1, dim)
        e = e_new.reshape(-1, 1, dim)
    return v, e


if __name__ == "__main__":
    def make_params(key, dim):
        # Shapes match the PyTorch module: every weight/bias is (dim, 1). Scaled by
        # 1/sqrt(dim) so the 3-unit cascade stays O(1) in f32 for the correctness check.
        scale = 1.0 / math.sqrt(dim)
        ks = jax.random.split(key, 15)
        return [tuple(jax.random.normal(ks[5 * u + j], (dim, 1), jnp.float32) * scale
                      for j in range(5))                 # (w_vv, w_ev, w_ve, b_v, b_e)
                for u in range(3)]

    root = jax.random.PRNGKey(0)
    # Two small configs:
    #   (200, 128): dim already lane-dense (no D pad), 2 grid points with a ragged last
    #               batch block (masked writes).
    #   (6, 32):    single full-extent batch block, D padded 32 -> 128 inside the wrapper.
    for (B, dim) in [(200, 128), (6, 32)]:
        root, kv, ke, kp = jax.random.split(root, 4)
        v = jax.random.normal(kv, (B, 1, dim), jnp.float32)
        e = jax.random.normal(ke, (B, 1, dim), jnp.float32)
        params = make_params(kp, dim)

        v_out, e_out = cac3_forward(v, e, params)
        v_out = jax.block_until_ready(v_out)
        e_out = jax.block_until_ready(e_out)

        v_ref, e_ref = cac3_reference(v, e, params)
        assert v_out.shape == (B, 1, dim) and e_out.shape == (B, 1, dim)
        assert v_out.dtype == v.dtype and e_out.dtype == e.dtype
        assert jnp.allclose(v_out, v_ref, rtol=1e-4, atol=1e-3), ("v mismatch", B, dim)
        assert jnp.allclose(e_out, e_ref, rtol=1e-4, atol=1e-3), ("e mismatch", B, dim)

    print("KERNEL_OK")
</pallas_src>

<mosaic_0001>
module attributes {stable_mosaic.version = 11 : i64} {
  func.func @cac3_kernel(%arg0: i32, %arg1: memref<128x128xf32, #tpu.memory_space<vmem>>, %arg2: memref<128x128xf32, #tpu.memory_space<vmem>>, %arg3: memref<12x128xf32, #tpu.memory_space<vmem>>, %arg4: memref<128x128xf32, #tpu.memory_space<vmem>>, %arg5: memref<128x128xf32, #tpu.memory_space<vmem>>) attributes {dimension_semantics = [#tpu.dimension_semantics<parallel>], iteration_bounds = array<i64: 2>, scalar_prefetch = 0 : i64, scratch_operands = 0 : i64, tpu.core_type = #tpu.core_type<tc>, window_params = [{transform_indices = @transform_0, window_bounds = array<i64: 128, 128>}, {transform_indices = @transform_1, window_bounds = array<i64: 128, 128>}, {pipeline_mode = #tpu.pipeline_mode<synchronous>, transform_indices = @transform_2, window_bounds = array<i64: 12, 128>}, {transform_indices = @transform_3, window_bounds = array<i64: 128, 128>}, {transform_indices = @transform_4, window_bounds = array<i64: 128, 128>}]} {
    %c0 = arith.constant 0 : index
    %c0_0 = arith.constant 0 : index
    %0 = vector.load %arg1[%c0, %c0_0] : memref<128x128xf32, #tpu.memory_space<vmem>>, vector<128x128xf32>
    %c0_1 = arith.constant 0 : index
    %c0_2 = arith.constant 0 : index
    %1 = vector.load %arg2[%c0_1, %c0_2] : memref<128x128xf32, #tpu.memory_space<vmem>>, vector<128x128xf32>
    %c0_3 = arith.constant 0 : index
    %c0_4 = arith.constant 0 : index
    %2 = vector.load %arg3[%c0_3, %c0_4] : memref<12x128xf32, #tpu.memory_space<vmem>>, vector<12x128xf32>
    %3 = vector.extract_strided_slice %2 {offsets = [0, 0], sizes = [1, 128], strides = [1, 1]} : vector<12x128xf32> to vector<1x128xf32>
    %4 = vector.extract_strided_slice %2 {offsets = [1, 0], sizes = [1, 128], strides = [1, 1]} : vector<12x128xf32> to vector<1x128xf32>
    %5 = vector.extract_strided_slice %2 {offsets = [2, 0], sizes = [1, 128], strides = [1, 1]} : vector<12x128xf32> to vector<1x128xf32>
    %6 = vector.extract_strided_slice %2 {offsets = [3, 0], sizes = [1, 128], strides = [1, 1]} : vector<12x128xf32> to vector<1x128xf32>
    %7 = vector.broadcast %3 : vector<1x128xf32> to vector<128x128xf32>
    %8 = arith.mulf %0, %7 : vector<128x128xf32>
    %cst = arith.constant dense<0.000000e+00> : vector<128xf32>
    %9 = vector.multi_reduction <add>, %8, %cst [1] : vector<128x128xf32> to vector<128xf32>
    %10 = vector.shape_cast %9 : vector<128xf32> to vector<128x1xf32>
    %11 = vector.broadcast %4 : vector<1x128xf32> to vector<128x128xf32>
    %12 = arith.mulf %0, %11 : vector<128x128xf32>
    %cst_5 = arith.constant dense<0.000000e+00> : vector<128xf32>
    %13 = vector.multi_reduction <add>, %12, %cst_5 [1] : vector<128x128xf32> to vector<128xf32>
    %14 = vector.shape_cast %13 : vector<128xf32> to vector<128x1xf32>
    %15 = vector.broadcast %10 : vector<128x1xf32> to vector<128x128xf32>
    %16 = arith.mulf %1, %15 : vector<128x128xf32>
    %17 = vector.broadcast %5 : vector<1x128xf32> to vector<128x128xf32>
    %18 = arith.addf %16, %17 : vector<128x128xf32>
    %19 = vector.broadcast %14 : vector<128x1xf32> to vector<128x128xf32>
    %20 = arith.mulf %1, %19 : vector<128x128xf32>
    %21 = vector.broadcast %6 : vector<1x128xf32> to vector<128x128xf32>
    %22 = arith.addf %20, %21 : vector<128x128xf32>
    %23 = vector.extract_strided_slice %2 {offsets = [4, 0], sizes = [1, 128], strides = [1, 1]} : vector<12x128xf32> to vector<1x128xf32>
    %24 = vector.extract_strided_slice %2 {offsets = [5, 0], sizes = [1, 128], strides = [1, 1]} : vector<12x128xf32> to vector<1x128xf32>
    %25 = vector.extract_strided_slice %2 {offsets = [6, 0], sizes = [1, 128], strides = [1, 1]} : vector<12x128xf32> to vector<1x128xf32>
    %26 = vector.extract_strided_slice %2 {offsets = [7, 0], sizes = [1, 128], strides = [1, 1]} : vector<12x128xf32> to vector<1x128xf32>
    %27 = vector.broadcast %23 : vector<1x128xf32> to vector<128x128xf32>
    %28 = arith.mulf %18, %27 : vector<128x128xf32>
    %cst_6 = arith.constant dense<0.000000e+00> : vector<128xf32>
    %29 = vector.multi_reduction <add>, %28, %cst_6 [1] : vector<128x128xf32> to vector<128xf32>
    %30 = vector.shape_cast %29 : vector<128xf32> to vector<128x1xf32>
    %31 = vector.broadcast %24 : vector<1x128xf32> to vector<128x128xf32>
    %32 = arith.mulf %18, %31 : vector<128x128xf32>
    %cst_7 = arith.constant dense<0.000000e+00> : vector<128xf32>
    %33 = vector.multi_reduction <add>, %32, %cst_7 [1] : vector<128x128xf32> to vector<128xf32>
    %34 = vector.shape_cast %33 : vector<128xf32> to vector<128x1xf32>
    %35 = vector.broadcast %30 : vector<128x1xf32> to vector<128x128xf32>
    %36 = arith.mulf %22, %35 : vector<128x128xf32>
    %37 = vector.broadcast %25 : vector<1x128xf32> to vector<128x128xf32>
    %38 = arith.addf %36, %37 : vector<128x128xf32>
    %39 = vector.broadcast %34 : vector<128x1xf32> to vector<128x128xf32>
    %40 = arith.mulf %22, %39 : vector<128x128xf32>
    %41 = vector.broadcast %26 : vector<1x128xf32> to vector<128x128xf32>
    %42 = arith.addf %40, %41 : vector<128x128xf32>
    %43 = vector.extract_strided_slice %2 {offsets = [8, 0], sizes = [1, 128], strides = [1, 1]} : vector<12x128xf32> to vector<1x128xf32>
    %44 = vector.extract_strided_slice %2 {offsets = [9, 0], sizes = [1, 128], strides = [1, 1]} : vector<12x128xf32> to vector<1x128xf32>
    %45 = vector.extract_strided_slice %2 {offsets = [10, 0], sizes = [1, 128], strides = [1, 1]} : vector<12x128xf32> to vector<1x128xf32>
    %46 = vector.extract_strided_slice %2 {offsets = [11, 0], sizes = [1, 128], strides = [1, 1]} : vector<12x128xf32> to vector<1x128xf32>
    %47 = vector.broadcast %43 : vector<1x128xf32> to vector<128x128xf32>
    %48 = arith.mulf %38, %47 : vector<128x128xf32>
    %cst_8 = arith.constant dense<0.000000e+00> : vector<128xf32>
    %49 = vector.multi_reduction <add>, %48, %cst_8 [1] : vector<128x128xf32> to vector<128xf32>
    %50 = vector.shape_cast %49 : vector<128xf32> to vector<128x1xf32>
    %51 = vector.broadcast %44 : vector<1x128xf32> to vector<128x128xf32>
    %52 = arith.mulf %38, %51 : vector<128x128xf32>
    %cst_9 = arith.constant dense<0.000000e+00> : vector<128xf32>
    %53 = vector.multi_reduction <add>, %52, %cst_9 [1] : vector<128x128xf32> to vector<128xf32>
    %54 = vector.shape_cast %53 : vector<128xf32> to vector<128x1xf32>
    %55 = vector.broadcast %50 : vector<128x1xf32> to vector<128x128xf32>
    %56 = arith.mulf %42, %55 : vector<128x128xf32>
    %57 = vector.broadcast %45 : vector<1x128xf32> to vector<128x128xf32>
    %58 = arith.addf %56, %57 : vector<128x128xf32>
    %59 = vector.broadcast %54 : vector<128x1xf32> to vector<128x128xf32>
    %60 = arith.mulf %42, %59 : vector<128x128xf32>
    %61 = vector.broadcast %46 : vector<1x128xf32> to vector<128x128xf32>
    %62 = arith.addf %60, %61 : vector<128x128xf32>
    %c0_10 = arith.constant 0 : index
    %c0_11 = arith.constant 0 : index
    %63 = vector.load %arg4[%c0_10, %c0_11] : memref<128x128xf32, #tpu.memory_space<vmem>>, vector<128x128xf32>
    tpu.vector_store %arg4[%c0_10, %c0_11], %58 {strides = array<i32>} : memref<128x128xf32, #tpu.memory_space<vmem>>, vector<128x128xf32>,
    %c0_12 = arith.constant 0 : index
    %c0_13 = arith.constant 0 : index
    %64 = vector.load %arg5[%c0_12, %c0_13] : memref<128x128xf32, #tpu.memory_space<vmem>>, vector<128x128xf32>
    tpu.vector_store %arg5[%c0_12, %c0_13], %62 {strides = array<i32>} : memref<128x128xf32, #tpu.memory_space<vmem>>, vector<128x128xf32>,
    return
  }
  func.func @transform_0(%arg0: i32) -> (i32, i32) {
    %c0_i32 = arith.constant 0 : i32
    %c0_i32_0 = arith.constant 0 : i32
    return %arg0, %c0_i32 : i32, i32
  }
  func.func @transform_1(%arg0: i32) -> (i32, i32) {
    %c0_i32 = arith.constant 0 : i32
    %c0_i32_0 = arith.constant 0 : i32
    return %arg0, %c0_i32 : i32, i32
  }
  func.func @transform_2(%arg0: i32) -> (i32, i32) {
    %c0_i32 = arith.constant 0 : i32
    %c0_i32_0 = arith.constant 0 : i32
    %c0_i32_1 = arith.constant 0 : i32
    return %c0_i32, %c0_i32_0 : i32, i32
  }
  func.func @transform_3(%arg0: i32) -> (i32, i32) {
    %c0_i32 = arith.constant 0 : i32
    %c0_i32_0 = arith.constant 0 : i32
    return %arg0, %c0_i32 : i32, i32
  }
  func.func @transform_4(%arg0: i32) -> (i32, i32) {
    %c0_i32 = arith.constant 0 : i32
    %c0_i32_0 = arith.constant 0 : i32
    return %arg0, %c0_i32 : i32, i32
  }
}

</mosaic_0001>

<llo_original>
// kernel: tpu_custom_call.1
$region0: #{tpu_custom_call.1}
  #allocation0 [shape = 'u32[]', space=smem, size = 0x4, offset = 0x4, fixed_abs, tag = 'smem constant byte address 0x4 - core index']
  #allocation1 [shape = 'u32[72,128]{1,0:T(1,128)}', space=vmem, size = 0x9000, scoped, tag = 'internal scratch']
  %s0 = inlined_call_operand.hbm [shape: f32[200,128], index: 0, kind: input, shape index: {}]
  %s1 = inlined_call_operand.hbm [shape: f32[200,128], index: 1, kind: input, shape index: {}]
  %s2 = inlined_call_operand.hbm [shape: f32[12,128], index: 2, kind: input, shape index: {}]
  %s3 = inlined_call_operand.hbm [shape: f32[200,128], index: 3, kind: output, shape index: {0}]
  %s4 = inlined_call_operand.hbm [shape: f32[200,128], index: 4, kind: output, shape index: {1}]
  %5 = xla_tuple %s3, %s4
  %s6 = sld [smem:[#allocation0]]
  $region65: #{tpu_custom_call.1} parent=0
    _
  %s8 = ssub.s32 1, %s6
  %s9 = scalar_select 0, %s8, %s6
  $region1: #{tpu_custom_call.1} parent=0
    #allocation2 [shape = 'u8[131072]{0}', space=vmem, size = 0x20000, scoped, tag = 'input window, operand 0']
    #allocation3 [shape = 's32[2]{0}', space=sflag, size = 0x8, scoped, tag = 'scoped memory for tpu_custom_call.1']
    #allocation4 [shape = 's32[2]{0}', space=sflag, size = 0x8, scoped, tag = 'scoped memory for tpu_custom_call.1']
    #allocation5 [shape = 'u8[131072]{0}', space=vmem, size = 0x20000, scoped, tag = 'input window, operand 1']
    #allocation6 [shape = 's32[2]{0}', space=sflag, size = 0x8, scoped, tag = 'scoped memory for tpu_custom_call.1']
    #allocation7 [shape = 'u8[8192]{0}', space=vmem, size = 0x2000, scoped, tag = 'input window, operand 2, single buffered']
    #allocation8 [shape = 'u8[131072]{0}', space=vmem, size = 0x20000, scoped, tag = 'output window, operand 0']
    #allocation9 [shape = 'u8[131072]{0}', space=vmem, size = 0x20000, scoped, tag = 'output window, operand 1']
    #allocation10 [shape = 's32[2]{0}', space=sflag, size = 0x8, scoped, tag = 'scoped memory for tpu_custom_call.1']
    %10 = vsyncpa [#allocation3], 0
    %s11 = scalar_lea.sflag [#allocation3], 1
    %12 = vsyncpa %s11, 0
    %13 = vsyncpa [#allocation6], 0
    %s14 = scalar_lea.sflag [#allocation6], 1
    %15 = vsyncpa %s14, 0
    %16 = vsyncpa [#allocation4], 0
    %s17 = scalar_lea.sflag [#allocation4], 1
    %18 = vsyncpa %s17, 0
    %19 = vsyncpa [#allocation10], 0
    %s20 = scalar_lea.sflag [#allocation10], 1
    %21 = vsyncpa %s20, 0
    loop: start=0, step=1, limit=4
    $region2: #{tpu_custom_call.1} parent=1 // loop_pre_header
      _
    $region3: #{tpu_custom_call.1} parent=1 // loop_header
      %s23 = sphi 0, %s27
      %p24 = scmp.ge.s32.totalorder %s23, 4
      %s33 = sphi 0, %s35
      %s36 = sphi 0, %s33
      %s37 = sphi 0, %s36
      %s53 = sphi 0, %s37
      %s59 = sphi 0, %s61
      %s62 = sphi 0, %s59
      %s63 = sphi 0, %s62
      %s79 = sphi 0, %s63
      %s83 = sphi 0, %s83
      %s85 = sphi 0, %s83
      %s86 = sphi 0, %s85
      %s100 = sphi 0, %s86
      %s106 = sphi 0, %s108
      %s109 = sphi 0, %s106
      %s110 = sphi 0, %s109
      %s126 = sphi 0, %s110
      %s132 = sphi 0, %s134
      %s135 = sphi 0, %s132
      %s136 = sphi 0, %s135
      %s152 = sphi 0, %s136
    $region4: #{tpu_custom_call.1} parent=1 // loop_header_branch
      %26 = sbr.rel (%p24) target = $region8
    $region5: #{tpu_custom_call.1} parent=1 // loop_body
      %s28 = ssub.s32 %s23, 1
      %s29 = ssub.s32 %s23, 2
      %s30 = sadd.s32 %s23, 1
      %s31 = ssub.s32 %s23, %s30
      %p32 = scmp.eq.s32.totalorder %s31, 0
      %s34 = sadd.s32 %s33, 1
      %s35 = scalar_select %p32, %s33, %s34
      %p38 = pneg %p32
      %p39 = scmp.eq.s32.totalorder %s23, 1
      %p40 = por %p38, %p39
      %p41 = scmp.ne.s32.totalorder %s33, %s36
      %p42 = scmp.eq.s32.totalorder %s23, 0
      %p43 = por %p41, %p42
      %p44 = scmp.ne.s32.totalorder %s33, %s36
      %p45 = scmp.eq.s32.totalorder %s28, 1
      %p46 = por %p44, %p45
      %p47 = scmp.ne.s32.totalorder %s36, %s37
      %p48 = scmp.eq.s32.totalorder %s28, 0
      %p49 = por %p47, %p48
      %p50 = scmp.ne.s32.totalorder %s36, %s37
      %p51 = scmp.eq.s32.totalorder %s29, 1
      %p52 = por %p50, %p51
      %p54 = scmp.ne.s32.totalorder %s37, %s53
      %p55 = scmp.eq.s32.totalorder %s29, 0
      %p56 = por %p54, %p55
      %s57 = ssub.s32 %s23, %s30
      %p58 = scmp.eq.s32.totalorder %s57, 0
      %s60 = sadd.s32 %s59, 1
      %s61 = scalar_select %p58, %s59, %s60
      %p64 = pneg %p58
      %p65 = scmp.eq.s32.totalorder %s23, 1
      %p66 = por %p64, %p65
      %p67 = scmp.ne.s32.totalorder %s59, %s62
      %p68 = scmp.eq.s32.totalorder %s23, 0
      %p69 = por %p67, %p68
      %p70 = scmp.ne.s32.totalorder %s59, %s62
      %p71 = scmp.eq.s32.totalorder %s28, 1
      %p72 = por %p70, %p71
      %p73 = scmp.ne.s32.totalorder %s62, %s63
      %p74 = scmp.eq.s32.totalorder %s28, 0
      %p75 = por %p73, %p74
      %p76 = scmp.ne.s32.totalorder %s62, %s63
      %p77 = scmp.eq.s32.totalorder %s29, 1
      %p78 = por %p76, %p77
      %p80 = scmp.ne.s32.totalorder %s63, %s79
      %p81 = scmp.eq.s32.totalorder %s29, 0
      %p82 = por %p80, %p81
      %s84 = sadd.s32 %s83, 1
      %p87 = scmp.eq.s32.totalorder %s23, 1
      %p88 = scmp.ne.s32.totalorder %s83, %s85
      %p89 = scmp.eq.s32.totalorder %s23, 0
      %p90 = por %p88, %p89
      %p91 = scmp.ne.s32.totalorder %s83, %s85
      %p92 = scmp.eq.s32.totalorder %s28, 1
      %p93 = por %p91, %p92
      %p94 = scmp.ne.s32.totalorder %s85, %s86
      %p95 = scmp.eq.s32.totalorder %s28, 0
      %p96 = por %p94, %p95
      %p97 = scmp.ne.s32.totalorder %s85, %s86
      %p98 = scmp.eq.s32.totalorder %s29, 1
      %p99 = por %p97, %p98
      %p101 = scmp.ne.s32.totalorder %s86, %s100
      %p102 = scmp.eq.s32.totalorder %s29, 0
      %p103 = por %p101, %p102
      %s104 = ssub.s32 %s23, %s30
      %p105 = scmp.eq.s32.totalorder %s104, 0
      %s107 = sadd.s32 %s106, 1
      %s108 = scalar_select %p105, %s106, %s107
      %p111 = pneg %p105
      %p112 = scmp.eq.s32.totalorder %s23, 1
      %p113 = por %p111, %p112
      %p114 = scmp.ne.s32.totalorder %s106, %s109
      %p115 = scmp.eq.s32.totalorder %s23, 0
      %p116 = por %p114, %p115
      %p117 = scmp.ne.s32.totalorder %s106, %s109
      %p118 = scmp.eq.s32.totalorder %s28, 1
      %p119 = por %p117, %p118
      %p120 = scmp.ne.s32.totalorder %s109, %s110
      %p121 = scmp.eq.s32.totalorder %s28, 0
      %p122 = por %p120, %p121
      %p123 = scmp.ne.s32.totalorder %s109, %s110
      %p124 = scmp.eq.s32.totalorder %s29, 1
      %p125 = por %p123, %p124
      %p127 = scmp.ne.s32.totalorder %s110, %s126
      %p128 = scmp.eq.s32.totalorder %s29, 0
      %p129 = por %p127, %p128
      %s130 = ssub.s32 %s23, %s30
      %p131 = scmp.eq.s32.totalorder %s130, 0
      %s133 = sadd.s32 %s132, 1
      %s134 = scalar_select %p131, %s132, %s133
      %p137 = pneg %p131
      %p138 = scmp.eq.s32.totalorder %s23, 1
      %p139 = por %p137, %p138
      %p140 = scmp.ne.s32.totalorder %s132, %s135
      %p141 = scmp.eq.s32.totalorder %s23, 0
      %p142 = por %p140, %p141
      %p143 = scmp.ne.s32.totalorder %s132, %s135
      %p144 = scmp.eq.s32.totalorder %s28, 1
      %p145 = por %p143, %p144
      %p146 = scmp.ne.s32.totalorder %s135, %s136
      %p147 = scmp.eq.s32.totalorder %s28, 0
      %p148 = por %p146, %p147
      %p149 = scmp.ne.s32.totalorder %s135, %s136
      %p150 = scmp.eq.s32.totalorder %s29, 1
      %p151 = por %p149, %p150
      %p153 = scmp.ne.s32.totalorder %s136, %s152
      %p154 = scmp.eq.s32.totalorder %s29, 0
      %p155 = por %p153, %p154
      %p156 = scmp.le.s32.totalorder 1, %s23
      %p157 = scmp.lt.s32.totalorder %s23, 3
      %p158 = pnand %p156, %p157
      %p159 = pneg %p158
      // Predicated region
      $region9: #{tpu_custom_call.1} parent=5 // pred_check
        _
      $region10: #{tpu_custom_call.1} parent=5 // pred_check_branch
        %161 = sbr.rel (%p158) target = $region12
      $region11: #{tpu_custom_call.1} parent=5 // pred_region
        %s162 = ssub.s32 %s23, 1
        // Predicated region
        $region13: #{tpu_custom_call.1} parent=11 // pred_check
          %p163 = pneg %p96
        $region14: #{tpu_custom_call.1} parent=11 // pred_check_branch
          %165 = sbr.rel (%p163) target = $region16
        $region15: #{tpu_custom_call.1} parent=11 // pred_region
          %167 = vsyncadd [#allocation6], 0
          %s168 = sshll.u32 %s2, 4
          %s169 = int_to_ptr.hbm [resolvable:$true] %s168
          %s170 = sshll.u32 [#allocation7], 4
          %s171 = int_to_ptr.vmem [resolvable:$true] %s170
          %176 = dma.hbm_to_vmem [thread:$0]  %s169, 256, %s171, [#allocation6], 128, 128, 8
        $region16: #{tpu_custom_call.1} parent=11 // pred_fallthru
          _
      $region12: #{tpu_custom_call.1} parent=5 // pred_fallthru
        _
      %p177 = scmp.lt.s32.totalorder %s23, 2
      // Predicated region
      $region17: #{tpu_custom_call.1} parent=5 // pred_check
        %p178 = pneg %p177
      $region18: #{tpu_custom_call.1} parent=5 // pred_check_branch
        %180 = sbr.rel (%p178) target = $region20
      $region19: #{tpu_custom_call.1} parent=5 // pred_region
        // Predicated region
        $region21: #{tpu_custom_call.1} parent=19 // pred_check
          %p181 = pneg %p43
        $region22: #{tpu_custom_call.1} parent=19 // pred_check_branch
          %183 = sbr.rel (%p181) target = $region24
        $region23: #{tpu_custom_call.1} parent=19 // pred_region
          %s184 = sand.u32 %s33, 1
          %s185 = scalar_lea.sflag [#allocation3], %s184
          %s186 = sand.u32 %s33, 1
          %s187 = smul.addr %s186, 128
          %s188 = scalar_lea.vmem [#allocation2], %s187
          %s189 = smul.u32 16, %s23
          %s190 = ssub.s32 25, %s189
          %p191 = scmp.lt.s32.totalorder %s190, 16
          %s192 = scalar_select %p191, %s190, 16
          %s193 = smul.u32 8, %s192
          %s194 = ssub.s32 128, %s193
          %s195 = sshll.u32 %s194, 4
          %196 = vsyncadd %s185, %s195
          %p197 = scmp.ne.s32.totalorder 0, %s193
          %s198 = smul.addr %s189, 8
          %s199 = scalar_lea.hbm %s0, %s198
          %s200 = smul.u32 8, %s192
          %s201 = sshll.u32 %s199, 4
          %s202 = int_to_ptr.hbm [resolvable:$true] %s201
          %s203 = sshll.u32 %s188, 4
          %s204 = int_to_ptr.vmem [resolvable:$true] %s203
          %s205 = sshll.u32 %s200, 4
          %209 = dma.hbm_to_vmem [thread:$0]  (%p197), %s202, %s205, %s204, %s185, 128, 128, 8
        $region24: #{tpu_custom_call.1} parent=19 // pred_fallthru
          _
        // Predicated region
        $region25: #{tpu_custom_call.1} parent=19 // pred_check
          %p210 = pneg %p69
        $region26: #{tpu_custom_call.1} parent=19 // pred_check_branch
          %212 = sbr.rel (%p210) target = $region28
        $region27: #{tpu_custom_call.1} parent=19 // pred_region
          %s213 = sand.u32 %s23, 1
          %s214 = scalar_lea.sflag [#allocation6], %s213
          %s215 = sand.u32 %s59, 1
          %s216 = smul.addr %s215, 128
          %s217 = scalar_lea.vmem [#allocation5], %s216
          %s218 = smul.u32 16, %s23
          %s219 = ssub.s32 25, %s218
          %p220 = scmp.lt.s32.totalorder %s219, 16
          %s221 = scalar_select %p220, %s219, 16
          %s222 = smul.u32 8, %s221
          %s223 = ssub.s32 128, %s222
          %s224 = sshll.u32 %s223, 4
          %225 = vsyncadd %s214, %s224
          %p226 = scmp.ne.s32.totalorder 0, %s222
          %s227 = smul.addr %s218, 8
          %s228 = scalar_lea.hbm %s1, %s227
          %s229 = smul.u32 8, %s221
          %s230 = sshll.u32 %s228, 4
          %s231 = int_to_ptr.hbm [resolvable:$true] %s230
          %s232 = sshll.u32 %s217, 4
          %s233 = int_to_ptr.vmem [resolvable:$true] %s232
          %s234 = sshll.u32 %s229, 4
          %238 = dma.hbm_to_vmem [thread:$0]  (%p226), %s231, %s234, %s233, %s214, 128, 128, 8
        $region28: #{tpu_custom_call.1} parent=19 // pred_fallthru
          _
      $region20: #{tpu_custom_call.1} parent=5 // pred_fallthru
        _
      %p239 = scmp.le.s32.totalorder 1, %s23
      %p240 = scmp.lt.s32.totalorder %s23, 3
      %p241 = pnand %p239, %p240
      %p242 = pneg %p241
      // Predicated region
      $region29: #{tpu_custom_call.1} parent=5 // pred_check
        _
      $region30: #{tpu_custom_call.1} parent=5 // pred_check_branch
        %244 = sbr.rel (%p241) target = $region32
      $region31: #{tpu_custom_call.1} parent=5 // pred_region
        %s245 = ssub.s32 %s23, 1
        %s246 = sand.u32 %s36, 1
        %s247 = scalar_lea.sflag [#allocation3], %s246
        %s248 = sand.u32 %s36, 1
        %s249 = smul.addr %s248, 128
        %s250 = scalar_lea.vmem [#allocation2], %s249
        // Predicated region
        $region33: #{tpu_custom_call.1} parent=31 // pred_check
          %p251 = pneg %p49
        $region34: #{tpu_custom_call.1} parent=31 // pred_check_branch
          %253 = sbr.rel (%p251) target = $region36
        $region35: #{tpu_custom_call.1} parent=31 // pred_region
          %255 = dma.done %s247, 2048
        $region36: #{tpu_custom_call.1} parent=31 // pred_fallthru
          _
        %s256 = sand.u32 %s28, 1
        %s257 = scalar_lea.sflag [#allocation6], %s256
        %s258 = sand.u32 %s62, 1
        %s259 = smul.addr %s258, 128
        %s260 = scalar_lea.vmem [#allocation5], %s259
        // Predicated region
        $region37: #{tpu_custom_call.1} parent=31 // pred_check
          %p261 = pneg %p75
        $region38: #{tpu_custom_call.1} parent=31 // pred_check_branch
          %263 = sbr.rel (%p261) target = $region40
        $region39: #{tpu_custom_call.1} parent=31 // pred_region
          %265 = dma.done %s257, 2048
        $region40: #{tpu_custom_call.1} parent=31 // pred_fallthru
          _
        // Predicated region
        $region41: #{tpu_custom_call.1} parent=31 // pred_check
          %p266 = pneg %p96
        $region42: #{tpu_custom_call.1} parent=31 // pred_check_branch
          %268 = sbr.rel (%p266) target = $region44
        $region43: #{tpu_custom_call.1} parent=31 // pred_region
          %270 = dma.done [#allocation6], 256
        $region44: #{tpu_custom_call.1} parent=31 // pred_fallthru
          _
        %s271 = sand.u32 %s36, 1
        %s272 = scalar_lea.sflag [#allocation3], %s271
        %s273 = sand.u32 %s36, 1
        %s274 = smul.addr %s273, 128
        %s275 = scalar_lea.vmem [#allocation2], %s274
        %p276 = pneg %p49
        %p277 = pneg %p46
        %s278 = sand.u32 %s28, 1
        %s279 = scalar_lea.sflag [#allocation6], %s278
        %s280 = sand.u32 %s62, 1
        %s281 = smul.addr %s280, 128
        %s282 = scalar_lea.vmem [#allocation5], %s281
        %p283 = pneg %p75
        %p284 = pneg %p72
        %p285 = pneg %p96
        %p286 = pneg %p93
        %p287 = pneg %p122
        %p288 = pneg %p119
        %s289 = sand.u32 %s109, 1
        %s290 = scalar_lea.sflag [#allocation4], %s289
        %s291 = sand.u32 %s109, 1
        %s292 = smul.addr %s291, 128
        %s293 = scalar_lea.vmem [#allocation8], %s292
        %p294 = pneg %p148
        %p295 = pneg %p145
        %s296 = sand.u32 %s135, 1
        %s297 = scalar_lea.sflag [#allocation10], %s296
        %s298 = sand.u32 %s135, 1
        %s299 = smul.addr %s298, 128
        %s300 = scalar_lea.vmem [#allocation9], %s299
        %s301 = smul.u32 16, %s28
        %s302 = ssub.s32 25, %s301
        %p303 = scmp.lt.s32.totalorder %s302, 16
        %s304 = scalar_select %p303, %s302, 16
        %s305 = smul.u32 8, %s304
        %s306 = smul.u32 16, %s28
        %s307 = ssub.s32 25, %s306
        %p308 = scmp.lt.s32.totalorder %s307, 16
        %s309 = scalar_select %p308, %s307, 16
        %s310 = smul.u32 8, %s309
        %s311 = smul.u32 16, %s28
        %s312 = ssub.s32 25, %s311
        %p313 = scmp.lt.s32.totalorder %s312, 16
        %s314 = scalar_select %p313, %s312, 16
        %s315 = smul.u32 8, %s314
        %s316 = smul.u32 16, %s28
        %s317 = ssub.s32 25, %s316
        %p318 = scmp.lt.s32.totalorder %s317, 16
        %s319 = scalar_select %p318, %s317, 16
        %s320 = smul.u32 8, %s319
        %v321 = vld [vmem:[%s250] sm:$0xff]
        %v322 = vld [vmem:[%s250 + $0x8] sm:$0xff]
        %v323 = vld [vmem:[%s250 + $0x10] sm:$0xff]
        %v324 = vld [vmem:[%s250 + $0x18] sm:$0xff]
        %v325 = vld [vmem:[%s250 + $0x20] sm:$0xff]
        %v326 = vld [vmem:[%s250 + $0x28] sm:$0xff]
        %v327 = vld [vmem:[%s250 + $0x30] sm:$0xff]
        %v328 = vld [vmem:[%s250 + $0x38] sm:$0xff]
        %v329 = vld [vmem:[%s250 + $0x40] sm:$0xff]
        %v330 = vld [vmem:[%s250 + $0x48] sm:$0xff]
        %v331 = vld [vmem:[%s250 + $0x50] sm:$0xff]
        %v332 = vld [vmem:[%s250 + $0x58] sm:$0xff]
        %v333 = vld [vmem:[%s250 + $0x60] sm:$0xff]
        %v334 = vld [vmem:[%s250 + $0x68] sm:$0xff]
        %v335 = vld [vmem:[%s250 + $0x70] sm:$0xff]
        %v336 = vld [vmem:[%s250 + $0x78] sm:$0xff]
        %v337 = vld [vmem:[%s260] sm:$0xff]
        %v338 = vld [vmem:[%s260 + $0x8] sm:$0xff]
        %v339 = vld [vmem:[%s260 + $0x10] sm:$0xff]
        %v340 = vld [vmem:[%s260 + $0x18] sm:$0xff]
        %v341 = vld [vmem:[%s260 + $0x20] sm:$0xff]
        %v342 = vld [vmem:[%s260 + $0x28] sm:$0xff]
        %v343 = vld [vmem:[%s260 + $0x30] sm:$0xff]
        %v344 = vld [vmem:[%s260 + $0x38] sm:$0xff]
        %v345 = vld [vmem:[%s260 + $0x40] sm:$0xff]
        %v346 = vld [vmem:[%s260 + $0x48] sm:$0xff]
        %v347 = vld [vmem:[%s260 + $0x50] sm:$0xff]
        %v348 = vld [vmem:[%s260 + $0x58] sm:$0xff]
        %v349 = vld [vmem:[%s260 + $0x60] sm:$0xff]
        %v350 = vld [vmem:[%s260 + $0x68] sm:$0xff]
        %v351 = vld [vmem:[%s260 + $0x70] sm:$0xff]
        %v352 = vld [vmem:[%s260 + $0x78] sm:$0xff]
        %v353 = vld [vmem:[#allocation7] sm:$0xff]
        %v354 = vld [vmem:[#allocation7 + $0x8] sm:$0xf]
        %v355 = vperm.slane %v353, 0
        %v356 = vmul.f32 %v321, %v355
        %v357 = vmul.f32 %v322, %v355
        %v358 = vmul.f32 %v323, %v355
        %v359 = vmul.f32 %v324, %v355
        %v360 = vmul.f32 %v325, %v355
        %v361 = vmul.f32 %v326, %v355
        %v362 = vmul.f32 %v327, %v355
        %v363 = vmul.f32 %v328, %v355
        %v364 = vmul.f32 %v329, %v355
        %v365 = vmul.f32 %v330, %v355
        %v366 = vmul.f32 %v331, %v355
        %v367 = vmul.f32 %v332, %v355
        %v368 = vmul.f32 %v333, %v355
        %v369 = vmul.f32 %v334, %v355
        %v370 = vmul.f32 %v335, %v355
        %v371 = vmul.f32 %v336, %v355
        %372 = vadd.xlane.f32.xlu0 %v356
        %v373 = vpop.xlane.xlu0 %372
        %374 = vadd.xlane.f32.xlu0 %v357
        %v375 = vpop.xlane.xlu0 %374
        %376 = vadd.xlane.f32.xlu0 %v358
        %v377 = vpop.xlane.xlu0 %376
        %378 = vadd.xlane.f32.xlu0 %v359
        %v379 = vpop.xlane.xlu0 %378
        %380 = vadd.xlane.f32.xlu0 %v360
        %v381 = vpop.xlane.xlu0 %380
        %382 = vadd.xlane.f32.xlu0 %v361
        %v383 = vpop.xlane.xlu0 %382
        %384 = vadd.xlane.f32.xlu0 %v362
        %v385 = vpop.xlane.xlu0 %384
        %386 = vadd.xlane.f32.xlu0 %v363
        %v387 = vpop.xlane.xlu0 %386
        %388 = vadd.xlane.f32.xlu0 %v364
        %v389 = vpop.xlane.xlu0 %388
        %390 = vadd.xlane.f32.xlu0 %v365
        %v391 = vpop.xlane.xlu0 %390
        %392 = vadd.xlane.f32.xlu0 %v366
        %v393 = vpop.xlane.xlu0 %392
        %394 = vadd.xlane.f32.xlu0 %v367
        %v395 = vpop.xlane.xlu0 %394
        %396 = vadd.xlane.f32.xlu0 %v368
        %v397 = vpop.xlane.xlu0 %396
        %398 = vadd.xlane.f32.xlu0 %v369
        %v399 = vpop.xlane.xlu0 %398
        %400 = vadd.xlane.f32.xlu0 %v370
        %v401 = vpop.xlane.xlu0 %400
        %402 = vadd.xlane.f32.xlu0 %v371
        %v403 = vpop.xlane.xlu0 %402
        %v404 = vperm.slane %v353, 1
        %v405 = vmul.f32 %v321, %v404
        %v406 = vmul.f32 %v322, %v404
        %v407 = vmul.f32 %v323, %v404
        %v408 = vmul.f32 %v324, %v404
        %v409 = vmul.f32 %v325, %v404
        %v410 = vmul.f32 %v326, %v404
        %v411 = vmul.f32 %v327, %v404
        %v412 = vmul.f32 %v328, %v404
        %v413 = vmul.f32 %v329, %v404
        %v414 = vmul.f32 %v330, %v404
        %v415 = vmul.f32 %v331, %v404
        %v416 = vmul.f32 %v332, %v404
        %v417 = vmul.f32 %v333, %v404
        %v418 = vmul.f32 %v334, %v404
        %v419 = vmul.f32 %v335, %v404
        %v420 = vmul.f32 %v336, %v404
        %421 = vadd.xlane.f32.xlu0 %v405
        %v422 = vpop.xlane.xlu0 %421
        %423 = vadd.xlane.f32.xlu0 %v406
        %v424 = vpop.xlane.xlu0 %423
        %425 = vadd.xlane.f32.xlu0 %v407
        %v426 = vpop.xlane.xlu0 %425
        %427 = vadd.xlane.f32.xlu0 %v408
        %v428 = vpop.xlane.xlu0 %427
        %429 = vadd.xlane.f32.xlu0 %v409
        %v430 = vpop.xlane.xlu0 %429
        %431 = vadd.xlane.f32.xlu0 %v410
        %v432 = vpop.xlane.xlu0 %431
        %433 = vadd.xlane.f32.xlu0 %v411
        %v434 = vpop.xlane.xlu0 %433
        %435 = vadd.xlane.f32.xlu0 %v412
        %v436 = vpop.xlane.xlu0 %435
        %437 = vadd.xlane.f32.xlu0 %v413
        %v438 = vpop.xlane.xlu0 %437
        %439 = vadd.xlane.f32.xlu0 %v414
        %v440 = vpop.xlane.xlu0 %439
        %441 = vadd.xlane.f32.xlu0 %v415
        %v442 = vpop.xlane.xlu0 %441
        %443 = vadd.xlane.f32.xlu0 %v416
        %v444 = vpop.xlane.xlu0 %443
        %445 = vadd.xlane.f32.xlu0 %v417
        %v446 = vpop.xlane.xlu0 %445
        %447 = vadd.xlane.f32.xlu0 %v418
        %v448 = vpop.xlane.xlu0 %447
        %449 = vadd.xlane.f32.xlu0 %v419
        %v450 = vpop.xlane.xlu0 %449
        %451 = vadd.xlane.f32.xlu0 %v420
        %v452 = vpop.xlane.xlu0 %451
        %v453 = vmul.f32 %v337, %v373
        %v454 = vmul.f32 %v338, %v375
        %v455 = vmul.f32 %v339, %v377
        %v456 = vmul.f32 %v340, %v379
        %v457 = vmul.f32 %v341, %v381
        %v458 = vmul.f32 %v342, %v383
        %v459 = vmul.f32 %v343, %v385
        %v460 = vmul.f32 %v344, %v387
        %v461 = vmul.f32 %v345, %v389
        %v462 = vmul.f32 %v346, %v391
        %v463 = vmul.f32 %v347, %v393
        %v464 = vmul.f32 %v348, %v395
        %v465 = vmul.f32 %v349, %v397
        %v466 = vmul.f32 %v350, %v399
        %v467 = vmul.f32 %v351, %v401
        %v468 = vmul.f32 %v352, %v403
        %v469 = vperm.slane %v353, 2
        %v470 = vadd.f32 %v453, %v469
        %v471 = vadd.f32 %v454, %v469
        %v472 = vadd.f32 %v455, %v469
        %v473 = vadd.f32 %v456, %v469
        %v474 = vadd.f32 %v457, %v469
        %v475 = vadd.f32 %v458, %v469
        %v476 = vadd.f32 %v459, %v469
        %v477 = vadd.f32 %v460, %v469
        %v478 = vadd.f32 %v461, %v469
        %v479 = vadd.f32 %v462, %v469
        %v480 = vadd.f32 %v463, %v469
        %v481 = vadd.f32 %v464, %v469
        %v482 = vadd.f32 %v465, %v469
        %v483 = vadd.f32 %v466, %v469
        %v484 = vadd.f32 %v467, %v469
        %v485 = vadd.f32 %v468, %v469
        %v486 = vmul.f32 %v337, %v422
        %v487 = vmul.f32 %v338, %v424
        %v488 = vmul.f32 %v339, %v426
        %v489 = vmul.f32 %v340, %v428
        %v490 = vmul.f32 %v341, %v430
        %v491 = vmul.f32 %v342, %v432
        %v492 = vmul.f32 %v343, %v434
        %v493 = vmul.f32 %v344, %v436
        %v494 = vmul.f32 %v345, %v438
        %v495 = vmul.f32 %v346, %v440
        %v496 = vmul.f32 %v347, %v442
        %v497 = vmul.f32 %v348, %v444
        %v498 = vmul.f32 %v349, %v446
        %v499 = vmul.f32 %v350, %v448
        %v500 = vmul.f32 %v351, %v450
        %v501 = vmul.f32 %v352, %v452
        %v502 = vperm.slane %v353, 3
        %v503 = vadd.f32 %v486, %v502
        %v504 = vadd.f32 %v487, %v502
        %v505 = vadd.f32 %v488, %v502
        %v506 = vadd.f32 %v489, %v502
        %v507 = vadd.f32 %v490, %v502
        %v508 = vadd.f32 %v491, %v502
        %v509 = vadd.f32 %v492, %v502
        %v510 = vadd.f32 %v493, %v502
        %v511 = vadd.f32 %v494, %v502
        %v512 = vadd.f32 %v495, %v502
        %v513 = vadd.f32 %v496, %v502
        %v514 = vadd.f32 %v497, %v502
        %v515 = vadd.f32 %v498, %v502
        %v516 = vadd.f32 %v499, %v502
        %v517 = vadd.f32 %v500, %v502
        %v518 = vadd.f32 %v501, %v502
        %v519 = vperm.slane %v353, 4
        %v520 = vmul.f32 %v470, %v519
        %v521 = vmul.f32 %v471, %v519
        %v522 = vmul.f32 %v472, %v519
        %v523 = vmul.f32 %v473, %v519
        %v524 = vmul.f32 %v474, %v519
        %v525 = vmul.f32 %v475, %v519
        %v526 = vmul.f32 %v476, %v519
        %v527 = vmul.f32 %v477, %v519
        %v528 = vmul.f32 %v478, %v519
        %v529 = vmul.f32 %v479, %v519
        %v530 = vmul.f32 %v480, %v519
        %v531 = vmul.f32 %v481, %v519
        %v532 = vmul.f32 %v482, %v519
        %v533 = vmul.f32 %v483, %v519
        %v534 = vmul.f32 %v484, %v519
        %v535 = vmul.f32 %v485, %v519
        %536 = vadd.xlane.f32.xlu0 %v520
        %v537 = vpop.xlane.xlu0 %536
        %538 = vadd.xlane.f32.xlu0 %v521
        %v539 = vpop.xlane.xlu0 %538
        %540 = vadd.xlane.f32.xlu0 %v522
        %v541 = vpop.xlane.xlu0 %540
        %542 = vadd.xlane.f32.xlu0 %v523
        %v543 = vpop.xlane.xlu0 %542
        %544 = vadd.xlane.f32.xlu0 %v524
        %v545 = vpop.xlane.xlu0 %544
        %546 = vadd.xlane.f32.xlu0 %v525
        %v547 = vpop.xlane.xlu0 %546
        %548 = vadd.xlane.f32.xlu0 %v526
        %v549 = vpop.xlane.xlu0 %548
        %550 = vadd.xlane.f32.xlu0 %v527
        %v551 = vpop.xlane.xlu0 %550
        %552 = vadd.xlane.f32.xlu0 %v528
        %v553 = vpop.xlane.xlu0 %552
        %554 = vadd.xlane.f32.xlu0 %v529
        %v555 = vpop.xlane.xlu0 %554
        %556 = vadd.xlane.f32.xlu0 %v530
        %v557 = vpop.xlane.xlu0 %556
        %558 = vadd.xlane.f32.xlu0 %v531
        %v559 = vpop.xlane.xlu0 %558
        %560 = vadd.xlane.f32.xlu0 %v532
        %v561 = vpop.xlane.xlu0 %560
        %562 = vadd.xlane.f32.xlu0 %v533
        %v563 = vpop.xlane.xlu0 %562
        %564 = vadd.xlane.f32.xlu0 %v534
        %v565 = vpop.xlane.xlu0 %564
        %566 = vadd.xlane.f32.xlu0 %v535
        %v567 = vpop.xlane.xlu0 %566
        %v568 = vperm.slane %v353, 5
        %v569 = vmul.f32 %v470, %v568
        %v570 = vmul.f32 %v471, %v568
        %v571 = vmul.f32 %v472, %v568
        %v572 = vmul.f32 %v473, %v568
        %v573 = vmul.f32 %v474, %v568
        %v574 = vmul.f32 %v475, %v568
        %v575 = vmul.f32 %v476, %v568
        %v576 = vmul.f32 %v477, %v568
        %v577 = vmul.f32 %v478, %v568
        %v578 = vmul.f32 %v479, %v568
        %v579 = vmul.f32 %v480, %v568
        %v580 = vmul.f32 %v481, %v568
        %v581 = vmul.f32 %v482, %v568
        %v582 = vmul.f32 %v483, %v568
        %v583 = vmul.f32 %v484, %v568
        %v584 = vmul.f32 %v485, %v568
        %585 = vadd.xlane.f32.xlu0 %v569
        %v586 = vpop.xlane.xlu0 %585
        %587 = vadd.xlane.f32.xlu0 %v570
        %v588 = vpop.xlane.xlu0 %587
        %589 = vadd.xlane.f32.xlu0 %v571
        %v590 = vpop.xlane.xlu0 %589
        %591 = vadd.xlane.f32.xlu0 %v572
        %v592 = vpop.xlane.xlu0 %591
        %593 = vadd.xlane.f32.xlu0 %v573
        %v594 = vpop.xlane.xlu0 %593
        %595 = vadd.xlane.f32.xlu0 %v574
        %v596 = vpop.xlane.xlu0 %595
        %597 = vadd.xlane.f32.xlu0 %v575
        %v598 = vpop.xlane.xlu0 %597
        %599 = vadd.xlane.f32.xlu0 %v576
        %v600 = vpop.xlane.xlu0 %599
        %601 = vadd.xlane.f32.xlu0 %v577
        %v602 = vpop.xlane.xlu0 %601
        %603 = vadd.xlane.f32.xlu0 %v578
        %v604 = vpop.xlane.xlu0 %603
        %605 = vadd.xlane.f32.xlu0 %v579
        %v606 = vpop.xlane.xlu0 %605
        %607 = vadd.xlane.f32.xlu0 %v580
        %v608 = vpop.xlane.xlu0 %607
        %609 = vadd.xlane.f32.xlu0 %v581
        %v610 = vpop.xlane.xlu0 %609
        %611 = vadd.xlane.f32.xlu0 %v582
        %v612 = vpop.xlane.xlu0 %611
        %613 = vadd.xlane.f32.xlu0 %v583
        %v614 = vpop.xlane.xlu0 %613
        %615 = vadd.xlane.f32.xlu0 %v584
        %v616 = vpop.xlane.xlu0 %615
        %v617 = vmul.f32 %v503, %v537
        %v618 = vmul.f32 %v504, %v539
        %v619 = vmul.f32 %v505, %v541
        %v620 = vmul.f32 %v506, %v543
        %v621 = vmul.f32 %v507, %v545
        %v622 = vmul.f32 %v508, %v547
        %v623 = vmul.f32 %v509, %v549
        %v624 = vmul.f32 %v510, %v551
        %v625 = vmul.f32 %v511, %v553
        %v626 = vmul.f32 %v512, %v555
        %v627 = vmul.f32 %v513, %v557
        %v628 = vmul.f32 %v514, %v559
        %v629 = vmul.f32 %v515, %v561
        %v630 = vmul.f32 %v516, %v563
        %v631 = vmul.f32 %v517, %v565
        %v632 = vmul.f32 %v518, %v567
        %v633 = vperm.slane %v353, 6
        %v634 = vadd.f32 %v617, %v633
        %v635 = vadd.f32 %v618, %v633
        %v636 = vadd.f32 %v619, %v633
        %v637 = vadd.f32 %v620, %v633
        %v638 = vadd.f32 %v621, %v633
        %v639 = vadd.f32 %v622, %v633
        %v640 = vadd.f32 %v623, %v633
        %v641 = vadd.f32 %v624, %v633
        %v642 = vadd.f32 %v625, %v633
        %v643 = vadd.f32 %v626, %v633
        %v644 = vadd.f32 %v627, %v633
        %v645 = vadd.f32 %v628, %v633
        %v646 = vadd.f32 %v629, %v633
        %v647 = vadd.f32 %v630, %v633
        %v648 = vadd.f32 %v631, %v633
        %v649 = vadd.f32 %v632, %v633
        %v650 = vmul.f32 %v503, %v586
        %v651 = vmul.f32 %v504, %v588
        %v652 = vmul.f32 %v505, %v590
        %v653 = vmul.f32 %v506, %v592
        %v654 = vmul.f32 %v507, %v594
        %v655 = vmul.f32 %v508, %v596
        %v656 = vmul.f32 %v509, %v598
        %v657 = vmul.f32 %v510, %v600
        %v658 = vmul.f32 %v511, %v602
        %v659 = vmul.f32 %v512, %v604
        %v660 = vmul.f32 %v513, %v606
        %v661 = vmul.f32 %v514, %v608
        %v662 = vmul.f32 %v515, %v610
        %v663 = vmul.f32 %v516, %v612
        %v664 = vmul.f32 %v517, %v614
        %v665 = vmul.f32 %v518, %v616
        %v666 = vperm.slane %v353, 7
        %v667 = vadd.f32 %v650, %v666
        %v668 = vadd.f32 %v651, %v666
        %v669 = vadd.f32 %v652, %v666
        %v670 = vadd.f32 %v653, %v666
        %v671 = vadd.f32 %v654, %v666
        %v672 = vadd.f32 %v655, %v666
        %v673 = vadd.f32 %v656, %v666
        %v674 = vadd.f32 %v657, %v666
        %v675 = vadd.f32 %v658, %v666
        %v676 = vadd.f32 %v659, %v666
        %v677 = vadd.f32 %v660, %v666
        %v678 = vadd.f32 %v661, %v666
        %v679 = vadd.f32 %v662, %v666
        %v680 = vadd.f32 %v663, %v666
        %v681 = vadd.f32 %v664, %v666
        %v682 = vadd.f32 %v665, %v666
        %v683 = vperm.slane %v354, 0
        %v684 = vmul.f32 %v634, %v683
        %v685 = vmul.f32 %v635, %v683
        %v686 = vmul.f32 %v636, %v683
        %v687 = vmul.f32 %v637, %v683
        %v688 = vmul.f32 %v638, %v683
        %v689 = vmul.f32 %v639, %v683
        %v690 = vmul.f32 %v640, %v683
        %v691 = vmul.f32 %v641, %v683
        %v692 = vmul.f32 %v642, %v683
        %v693 = vmul.f32 %v643, %v683
        %v694 = vmul.f32 %v644, %v683
        %v695 = vmul.f32 %v645, %v683
        %v696 = vmul.f32 %v646, %v683
        %v697 = vmul.f32 %v647, %v683
        %v698 = vmul.f32 %v648, %v683
        %v699 = vmul.f32 %v649, %v683
        %700 = vadd.xlane.f32.xlu0 %v684
        %v701 = vpop.xlane.xlu0 %700
        %702 = vadd.xlane.f32.xlu0 %v685
        %v703 = vpop.xlane.xlu0 %702
        %704 = vadd.xlane.f32.xlu0 %v686
        %v705 = vpop.xlane.xlu0 %704
        %706 = vadd.xlane.f32.xlu0 %v687
        %v707 = vpop.xlane.xlu0 %706
        %708 = vadd.xlane.f32.xlu0 %v688
        %v709 = vpop.xlane.xlu0 %708
        %710 = vadd.xlane.f32.xlu0 %v689
        %v711 = vpop.xlane.xlu0 %710
        %712 = vadd.xlane.f32.xlu0 %v690
        %v713 = vpop.xlane.xlu0 %712
        %714 = vadd.xlane.f32.xlu0 %v691
        %v715 = vpop.xlane.xlu0 %714
        %716 = vadd.xlane.f32.xlu0 %v692
        %v717 = vpop.xlane.xlu0 %716
        %718 = vadd.xlane.f32.xlu0 %v693
        %v719 = vpop.xlane.xlu0 %718
        %720 = vadd.xlane.f32.xlu0 %v694
        %v721 = vpop.xlane.xlu0 %720
        %722 = vadd.xlane.f32.xlu0 %v695
        %v723 = vpop.xlane.xlu0 %722
        %724 = vadd.xlane.f32.xlu0 %v696
        %v725 = vpop.xlane.xlu0 %724
        %726 = vadd.xlane.f32.xlu0 %v697
        %v727 = vpop.xlane.xlu0 %726
        %728 = vadd.xlane.f32.xlu0 %v698
        %v729 = vpop.xlane.xlu0 %728
        %730 = vadd.xlane.f32.xlu0 %v699
        %v731 = vpop.xlane.xlu0 %730
        %v732 = vperm.slane %v354, 1
        %v733 = vmul.f32 %v634, %v732
        %v734 = vmul.f32 %v635, %v732
        %v735 = vmul.f32 %v636, %v732
        %v736 = vmul.f32 %v637, %v732
        %v737 = vmul.f32 %v638, %v732
        %v738 = vmul.f32 %v639, %v732
        %v739 = vmul.f32 %v640, %v732
        %v740 = vmul.f32 %v641, %v732
        %v741 = vmul.f32 %v642, %v732
        %v742 = vmul.f32 %v643, %v732
        %v743 = vmul.f32 %v644, %v732
        %v744 = vmul.f32 %v645, %v732
        %v745 = vmul.f32 %v646, %v732
        %v746 = vmul.f32 %v647, %v732
        %v747 = vmul.f32 %v648, %v732
        %v748 = vmul.f32 %v649, %v732
        %749 = vadd.xlane.f32.xlu0 %v733
        %v750 = vpop.xlane.xlu0 %749
        %751 = vadd.xlane.f32.xlu0 %v734
        %v752 = vpop.xlane.xlu0 %751
        %753 = vadd.xlane.f32.xlu0 %v735
        %v754 = vpop.xlane.xlu0 %753
        %755 = vadd.xlane.f32.xlu0 %v736
        %v756 = vpop.xlane.xlu0 %755
        %757 = vadd.xlane.f32.xlu0 %v737
        %v758 = vpop.xlane.xlu0 %757
        %759 = vadd.xlane.f32.xlu0 %v738
        %v760 = vpop.xlane.xlu0 %759
        %761 = vadd.xlane.f32.xlu0 %v739
        %v762 = vpop.xlane.xlu0 %761
        %763 = vadd.xlane.f32.xlu0 %v740
        %v764 = vpop.xlane.xlu0 %763
        %765 = vadd.xlane.f32.xlu0 %v741
        %v766 = vpop.xlane.xlu0 %765
        %767 = vadd.xlane.f32.xlu0 %v742
        %v768 = vpop.xlane.xlu0 %767
        %769 = vadd.xlane.f32.xlu0 %v743
        %v770 = vpop.xlane.xlu0 %769
        %771 = vadd.xlane.f32.xlu0 %v744
        %v772 = vpop.xlane.xlu0 %771
        %773 = vadd.xlane.f32.xlu0 %v745
        %v774 = vpop.xlane.xlu0 %773
        %775 = vadd.xlane.f32.xlu0 %v746
        %v776 = vpop.xlane.xlu0 %775
        %777 = vadd.xlane.f32.xlu0 %v747
        %v778 = vpop.xlane.xlu0 %777
        %779 = vadd.xlane.f32.xlu0 %v748
        %v780 = vpop.xlane.xlu0 %779
        %v781 = vmul.f32 %v667, %v701
        %v782 = vmul.f32 %v668, %v703
        %v783 = vmul.f32 %v669, %v705
        %v784 = vmul.f32 %v670, %v707
        %v785 = vmul.f32 %v671, %v709
        %v786 = vmul.f32 %v672, %v711
        %v787 = vmul.f32 %v673, %v713
        %v788 = vmul.f32 %v674, %v715
        %v789 = vmul.f32 %v675, %v717
        %v790 = vmul.f32 %v676, %v719
        %v791 = vmul.f32 %v677, %v721
        %v792 = vmul.f32 %v678, %v723
        %v793 = vmul.f32 %v679, %v725
        %v794 = vmul.f32 %v680, %v727
        %v795 = vmul.f32 %v681, %v729
        %v796 = vmul.f32 %v682, %v731
        %v797 = vperm.slane %v354, 2
        %v798 = vadd.f32 %v781, %v797
        %v799 = vadd.f32 %v782, %v797
        %v800 = vadd.f32 %v783, %v797
        %v801 = vadd.f32 %v784, %v797
        %v802 = vadd.f32 %v785, %v797
        %v803 = vadd.f32 %v786, %v797
        %v804 = vadd.f32 %v787, %v797
        %v805 = vadd.f32 %v788, %v797
        %v806 = vadd.f32 %v789, %v797
        %v807 = vadd.f32 %v790, %v797
        %v808 = vadd.f32 %v791, %v797
        %v809 = vadd.f32 %v792, %v797
        %v810 = vadd.f32 %v793, %v797
        %v811 = vadd.f32 %v794, %v797
        %v812 = vadd.f32 %v795, %v797
        %v813 = vadd.f32 %v796, %v797
        %v814 = vmul.f32 %v667, %v750
        %v815 = vmul.f32 %v668, %v752
        %v816 = vmul.f32 %v669, %v754
        %v817 = vmul.f32 %v670, %v756
        %v818 = vmul.f32 %v671, %v758
        %v819 = vmul.f32 %v672, %v760
        %v820 = vmul.f32 %v673, %v762
        %v821 = vmul.f32 %v674, %v764
        %v822 = vmul.f32 %v675, %v766
        %v823 = vmul.f32 %v676, %v768
        %v824 = vmul.f32 %v677, %v770
        %v825 = vmul.f32 %v678, %v772
        %v826 = vmul.f32 %v679, %v774
        %v827 = vmul.f32 %v680, %v776
        %v828 = vmul.f32 %v681, %v778
        %v829 = vmul.f32 %v682, %v780
        %v830 = vperm.slane %v354, 3
        %v831 = vadd.f32 %v814, %v830
        %v832 = vadd.f32 %v815, %v830
        %v833 = vadd.f32 %v816, %v830
        %v834 = vadd.f32 %v817, %v830
        %v835 = vadd.f32 %v818, %v830
        %v836 = vadd.f32 %v819, %v830
        %v837 = vadd.f32 %v820, %v830
        %v838 = vadd.f32 %v821, %v830
        %v839 = vadd.f32 %v822, %v830
        %v840 = vadd.f32 %v823, %v830
        %v841 = vadd.f32 %v824, %v830
        %v842 = vadd.f32 %v825, %v830
        %v843 = vadd.f32 %v826, %v830
        %v844 = vadd.f32 %v827, %v830
        %v845 = vadd.f32 %v828, %v830
        %v846 = vadd.f32 %v829, %v830
        %847 = vst [vmem:[%s293] sm:$0xff] %v798
        %848 = vst [vmem:[%s293 + $0x8] sm:$0xff] %v799
        %849 = vst [vmem:[%s293 + $0x10] sm:$0xff] %v800
        %850 = vst [vmem:[%s293 + $0x18] sm:$0xff] %v801
        %851 = vst [vmem:[%s293 + $0x20] sm:$0xff] %v802
        %852 = vst [vmem:[%s293 + $0x28] sm:$0xff] %v803
        %853 = vst [vmem:[%s293 + $0x30] sm:$0xff] %v804
        %854 = vst [vmem:[%s293 + $0x38] sm:$0xff] %v805
        %855 = vst [vmem:[%s293 + $0x40] sm:$0xff] %v806
        %856 = vst [vmem:[%s293 + $0x48] sm:$0xff] %v807
        %857 = vst [vmem:[%s293 + $0x50] sm:$0xff] %v808
        %858 = vst [vmem:[%s293 + $0x58] sm:$0xff] %v809
        %859 = vst [vmem:[%s293 + $0x60] sm:$0xff] %v810
        %860 = vst [vmem:[%s293 + $0x68] sm:$0xff] %v811
        %861 = vst [vmem:[%s293 + $0x70] sm:$0xff] %v812
        %862 = vst [vmem:[%s293 + $0x78] sm:$0xff] %v813
        %863 = vst [vmem:[%s300] sm:$0xff] %v831
        %864 = vst [vmem:[%s300 + $0x8] sm:$0xff] %v832
        %865 = vst [vmem:[%s300 + $0x10] sm:$0xff] %v833
        %866 = vst [vmem:[%s300 + $0x18] sm:$0xff] %v834
        %867 = vst [vmem:[%s300 + $0x20] sm:$0xff] %v835
        %868 = vst [vmem:[%s300 + $0x28] sm:$0xff] %v836
        %869 = vst [vmem:[%s300 + $0x30] sm:$0xff] %v837
        %870 = vst [vmem:[%s300 + $0x38] sm:$0xff] %v838
        %871 = vst [vmem:[%s300 + $0x40] sm:$0xff] %v839
        %872 = vst [vmem:[%s300 + $0x48] sm:$0xff] %v840
        %873 = vst [vmem:[%s300 + $0x50] sm:$0xff] %v841
        %874 = vst [vmem:[%s300 + $0x58] sm:$0xff] %v842
        %875 = vst [vmem:[%s300 + $0x60] sm:$0xff] %v843
        %876 = vst [vmem:[%s300 + $0x68] sm:$0xff] %v844
        %877 = vst [vmem:[%s300 + $0x70] sm:$0xff] %v845
        %878 = vst [vmem:[%s300 + $0x78] sm:$0xff] %v846
        %s879 = sand.u32 %s109, 1
        %s880 = scalar_lea.sflag [#allocation4], %s879
        %s881 = sand.u32 %s109, 1
        %s882 = smul.addr %s881, 128
        %s883 = scalar_lea.vmem [#allocation8], %s882
        %s884 = sand.u32 %s135, 1
        %s885 = scalar_lea.sflag [#allocation10], %s884
        %s886 = sand.u32 %s135, 1
        %s887 = smul.addr %s886, 128
        %s888 = scalar_lea.vmem [#allocation9], %s887
        // Predicated region
        $region45: #{tpu_custom_call.1} parent=31 // pred_check
          %p889 = pneg %p119
        $region46: #{tpu_custom_call.1} parent=31 // pred_check_branch
          %891 = sbr.rel (%p889) target = $region48
        $region47: #{tpu_custom_call.1} parent=31 // pred_region
          %s892 = smul.u32 16, %s28
          %s893 = ssub.s32 25, %s892
          %p894 = scmp.lt.s32.totalorder %s893, 16
          %s895 = scalar_select %p894, %s893, 16
          %s896 = smul.u32 8, %s895
          %s897 = ssub.s32 128, %s896
          %s898 = sshll.u32 %s897, 4
          %899 = vsyncadd %s880, %s898
          %p900 = scmp.ne.s32.totalorder 0, %s896
          %s901 = smul.addr %s892, 8
          %s902 = scalar_lea.hbm %s3, %s901
          %s903 = smul.u32 8, %s895
          %s904 = sshll.u32 %s883, 4
          %s905 = int_to_ptr.vmem [resolvable:$true] %s904
          %s906 = sshll.u32 %s902, 4
          %s907 = int_to_ptr.hbm [resolvable:$true] %s906
          %s908 = sshll.u32 %s903, 4
          %912 = dma.vmem_to_hbm [thread:$0]  (%p900), %s905, %s908, %s907, %s880, 128, 128, 8
        $region48: #{tpu_custom_call.1} parent=31 // pred_fallthru
          _
        // Predicated region
        $region49: #{tpu_custom_call.1} parent=31 // pred_check
          %p913 = pneg %p145
        $region50: #{tpu_custom_call.1} parent=31 // pred_check_branch
          %915 = sbr.rel (%p913) target = $region52
        $region51: #{tpu_custom_call.1} parent=31 // pred_region
          %s916 = smul.u32 16, %s28
          %s917 = ssub.s32 25, %s916
          %p918 = scmp.lt.s32.totalorder %s917, 16
          %s919 = scalar_select %p918, %s917, 16
          %s920 = smul.u32 8, %s919
          %s921 = ssub.s32 128, %s920
          %s922 = sshll.u32 %s921, 4
          %923 = vsyncadd %s885, %s922
          %p924 = scmp.ne.s32.totalorder 0, %s920
          %s925 = smul.addr %s916, 8
          %s926 = scalar_lea.hbm %s4, %s925
          %s927 = smul.u32 8, %s919
          %s928 = sshll.u32 %s888, 4
          %s929 = int_to_ptr.vmem [resolvable:$true] %s928
          %s930 = sshll.u32 %s926, 4
          %s931 = int_to_ptr.hbm [resolvable:$true] %s930
          %s932 = sshll.u32 %s927, 4
          %936 = dma.vmem_to_hbm [thread:$0]  (%p924), %s929, %s932, %s931, %s885, 128, 128, 8
        $region52: #{tpu_custom_call.1} parent=31 // pred_fallthru
          _
      $region32: #{tpu_custom_call.1} parent=5 // pred_fallthru
        _
      %p937 = scmp.le.s32.totalorder 2, %s23
      // Predicated region
      $region53: #{tpu_custom_call.1} parent=5 // pred_check
        %p938 = pneg %p937
      $region54: #{tpu_custom_call.1} parent=5 // pred_check_branch
        %940 = sbr.rel (%p938) target = $region56
      $region55: #{tpu_custom_call.1} parent=5 // pred_region
        %s941 = ssub.s32 %s23, 2
        // Predicated region
        $region57: #{tpu_custom_call.1} parent=55 // pred_check
          %p942 = pneg %p125
        $region58: #{tpu_custom_call.1} parent=55 // pred_check_branch
          %944 = sbr.rel (%p942) target = $region60
        $region59: #{tpu_custom_call.1} parent=55 // pred_region
          %s945 = sand.u32 %s110, 1
          %s946 = scalar_lea.sflag [#allocation4], %s945
          %s947 = sand.u32 %s110, 1
          %s948 = smul.addr %s947, 128
          %s949 = scalar_lea.vmem [#allocation8], %s948
          %951 = dma.done %s946, 2048
        $region60: #{tpu_custom_call.1} parent=55 // pred_fallthru
          _
        // Predicated region
        $region61: #{tpu_custom_call.1} parent=55 // pred_check
          %p952 = pneg %p151
        $region62: #{tpu_custom_call.1} parent=55 // pred_check_branch
          %954 = sbr.rel (%p952) target = $region64
        $region63: #{tpu_custom_call.1} parent=55 // pred_region
          %s955 = sand.u32 %s136, 1
          %s956 = scalar_lea.sflag [#allocation10], %s955
          %s957 = sand.u32 %s136, 1
          %s958 = smul.addr %s957, 128
          %s959 = scalar_lea.vmem [#allocation9], %s958
          %961 = dma.done %s956, 2048
        $region64: #{tpu_custom_call.1} parent=55 // pred_fallthru
          _
      $region56: #{tpu_custom_call.1} parent=5 // pred_fallthru
        _
    $region6: #{tpu_custom_call.1} parent=1 // loop_footer
      %s27 = sadd.s32 1, %s23
    $region7: #{tpu_custom_call.1} parent=1 // loop_footer_branch
      %22 = sbr.rel target = $region3
    $region8: #{tpu_custom_call.1} parent=1 // loop_exit
      _
    %962 = vsyncpa [#allocation3], 1
    %s963 = scalar_lea.sflag [#allocation3], 1
    %964 = vsyncpa %s963, 1
    %965 = vsyncpa [#allocation6], 1
    %s966 = scalar_lea.sflag [#allocation6], 1
    %967 = vsyncpa %s966, 1
    %968 = vsyncpa [#allocation4], 1
    %s969 = scalar_lea.sflag [#allocation4], 1
    %970 = vsyncpa %s969, 1
    %971 = vsyncpa [#allocation10], 1
    %s972 = scalar_lea.sflag [#allocation10], 1
    %973 = vsyncpa %s972, 1

</llo_original>
